<compile_context>
chip_gen: v7x
topology: tpu7x:2x2x1
jax: 0.10.0
libtpu: 0.0.40
codegen_flags: <defaults>
</compile_context>

<pallas_src>
import math

import jax
import jax.numpy as jnp
from jax.experimental import pallas as pl
from jax.experimental.pallas import tpu as pltpu

_SUBLANE = 8                 # sublane granularity (second-last dim)
_MAX_TILE_ELEMS = 512 * 1024 # 2 MiB of f32 per buffer (safe on v5e/v6e/v7x)


def _poly3_kernel(coef_ref, x_ref, o_ref):
    # coef_ref: SMEM (4,) f32 via scalar prefetch -> a, b, c, d
    # x_ref   : VMEM (tile_rows, w) lane-dense tile
    a = coef_ref[0]
    b = coef_ref[1]
    c = coef_ref[2]
    d = coef_ref[3]
    x = x_ref[...]
    # Horner form: y = a + x*(b + x*(c + x*d))
    o_ref[...] = a + x * (b + x * (c + x * d))


def _choose_width(n):
    """Widest lane-dense last dim that avoids padding; fall back to 512."""
    for w in (1024, 512, 256, 128):
        if n % w == 0:
            return w
    return 512  # N not a multiple of 128 -> small tail pad (< 512 elems)


def polynomial3_forward(x_1d, coeffs):
    """y = a + b*x + c*x^2 + d*x^3 elementwise via a Pallas TPU kernel.

    x_1d   : (N,) float32
    coeffs : (4,) float32  [a, b, c, d]
    """
    n = x_1d.shape[0]
    w = _choose_width(n)
    rows = pl.cdiv(n, w)
    n_pad = rows * w

    if n_pad == n:
        # Free (metadata-only) reshape to the lane-dense slab — no HBM copy.
        x2d = x_1d.reshape(rows, w)
    else:
        # TODO(synk): only taken when N is not a multiple of 128; the pad is a
        # single extra read+write of x. All 128-aligned sizes take the no-copy
        # path above.
        x2d = jnp.pad(x_1d, (0, n_pad - n)).reshape(rows, w)

    # Tile selection:
    #  * tiny problems: one block equal to the full array (shape rule: block
    #    dims equal to full array dims are always legal).
    #  * otherwise: at least 2 grid steps (so the "parallel" axis spans both
    #    v7x TensorCores), tile_rows a multiple of 8, capped at 2 MiB/buffer.
    max_tile_rows = max(_SUBLANE, _MAX_TILE_ELEMS // w)
    if rows <= 2 * _SUBLANE:
        tile_rows = rows
    else:
        half = pl.cdiv(rows, 2)
        tile_rows = min(max_tile_rows,
                        ((half + _SUBLANE - 1) // _SUBLANE) * _SUBLANE)
    grid_steps = pl.cdiv(rows, tile_rows)   # ragged last block is clipped

    out2d = pl.pallas_call(
        _poly3_kernel,
        out_shape=jax.ShapeDtypeStruct((rows, w), jnp.float32),
        grid_spec=pltpu.PrefetchScalarGridSpec(
            num_scalar_prefetch=1,  # coeffs land in SMEM once, before the grid
            grid=(grid_steps,),
            in_specs=[
                pl.BlockSpec((tile_rows, w), lambda i, coef: (i, 0)),
            ],
            out_specs=pl.BlockSpec((tile_rows, w), lambda i, coef: (i, 0)),
        ),
        compiler_params=pltpu.CompilerParams(
            # >=2 grid steps for any non-tiny N -> shards across v7x's two TCs.
            dimension_semantics=("parallel",),
        ),
    )(coeffs, x2d)

    y = out2d.reshape(n_pad)
    if n_pad != n:
        y = y[:n]
    return y


def _reference(x, coeffs):
    a, b, c, d = coeffs[0], coeffs[1], coeffs[2], coeffs[3]
    return a + b * x + c * x ** 2 + d * x ** 3


if __name__ == "__main__":
    # Deterministic "randn" parameters a, b, c, d (scalars in the PyTorch module).
    key = jax.random.PRNGKey(0)
    coeffs = jax.random.normal(key, (4,), dtype=jnp.float32)  # [a, b, c, d]

    # Primary case mirrors the PyTorch script: x = linspace(-pi, pi, 2000).
    # (Tiny single-block path; pad of 48 elements since 2000 % 128 != 0.)
    x = jnp.linspace(-math.pi, math.pi, 2000, dtype=jnp.float32)
    y = jax.block_until_ready(polynomial3_forward(x, coeffs))
    assert y.shape == (2000,)
    assert jnp.allclose(y, _reference(x, coeffs), atol=1e-4, rtol=1e-5)

    # Small extra checks exercising the no-pad multi-block path (65536 -> w=1024,
    # 2 blocks) and the ragged clipped last block path (1201*128 -> w=128,
    # rows=1201, tile_rows=608, grid=2 with a clipped last block).
    for n_extra in (65536, 1201 * 128):
        xe = jnp.linspace(-math.pi, math.pi, n_extra, dtype=jnp.float32)
        ye = jax.block_until_ready(polynomial3_forward(xe, coeffs))
        assert ye.shape == (n_extra,)
        assert jnp.allclose(ye, _reference(xe, coeffs), atol=1e-4, rtol=1e-5)

    # Note: for real benchmarking use N >= 1e7; at these sizes dispatch overhead
    # dominates and tiling choices are not observable.
    print("KERNEL_OK")
</pallas_src>

<mosaic_0001>
module attributes {stable_mosaic.version = 11 : i64} {
  func.func @_poly3_kernel(%arg0: i32, %arg1: memref<4xf32, #tpu.memory_space<smem>>, %arg2: memref<4x512xf32, #tpu.memory_space<vmem>>, %arg3: memref<4x512xf32, #tpu.memory_space<vmem>>) attributes {dimension_semantics = [#tpu.dimension_semantics<parallel>], iteration_bounds = array<i64: 1>, scalar_prefetch = 1 : i64, scratch_operands = 0 : i64, tpu.core_type = #tpu.core_type<tc>, window_params = [{transform_indices = @transform_0, window_bounds = array<i64: 4, 512>}, {transform_indices = @transform_1, window_bounds = array<i64: 4, 512>}]} {
    %c0 = arith.constant 0 : index
    %0 = memref.load %arg1[%c0] : memref<4xf32, #tpu.memory_space<smem>>
    %c1 = arith.constant 1 : index
    %1 = memref.load %arg1[%c1] : memref<4xf32, #tpu.memory_space<smem>>
    %c2 = arith.constant 2 : index
    %2 = memref.load %arg1[%c2] : memref<4xf32, #tpu.memory_space<smem>>
    %c3 = arith.constant 3 : index
    %3 = memref.load %arg1[%c3] : memref<4xf32, #tpu.memory_space<smem>>
    %c0_0 = arith.constant 0 : index
    %c0_1 = arith.constant 0 : index
    %4 = vector.load %arg2[%c0_0, %c0_1] : memref<4x512xf32, #tpu.memory_space<vmem>>, vector<4x512xf32>
    %5 = vector.broadcast %3 : f32 to vector<4x512xf32>
    %6 = arith.mulf %4, %5 : vector<4x512xf32>
    %7 = vector.broadcast %2 : f32 to vector<4x512xf32>
    %8 = arith.addf %7, %6 : vector<4x512xf32>
    %9 = arith.mulf %4, %8 : vector<4x512xf32>
    %10 = vector.broadcast %1 : f32 to vector<4x512xf32>
    %11 = arith.addf %10, %9 : vector<4x512xf32>
    %12 = arith.mulf %4, %11 : vector<4x512xf32>
    %13 = vector.broadcast %0 : f32 to vector<4x512xf32>
    %14 = arith.addf %13, %12 : vector<4x512xf32>
    %c0_2 = arith.constant 0 : index
    %c0_3 = arith.constant 0 : index
    %15 = vector.load %arg3[%c0_2, %c0_3] : memref<4x512xf32, #tpu.memory_space<vmem>>, vector<4x512xf32>
    tpu.vector_store %arg3[%c0_2, %c0_3], %14 {strides = array<i32>} : memref<4x512xf32, #tpu.memory_space<vmem>>, vector<4x512xf32>,
    return
  }
  func.func @transform_0(%arg0: i32, %arg1: memref<4xf32, #tpu.memory_space<smem>>) -> (i32, i32) {
    %c0_i32 = arith.constant 0 : i32
    %c0_i32_0 = arith.constant 0 : i32
    return %arg0, %c0_i32 : i32, i32
  }
  func.func @transform_1(%arg0: i32, %arg1: memref<4xf32, #tpu.memory_space<smem>>) -> (i32, i32) {
    %c0_i32 = arith.constant 0 : i32
    %c0_i32_0 = arith.constant 0 : i32
    return %arg0, %c0_i32 : i32, i32
  }
}

</mosaic_0001>

<llo_original>
// kernel: tpu_custom_call.1
$region0: #{tpu_custom_call.1}
  #allocation0 [shape = 'u32[]', space=smem, size = 0x4, offset = 0x4, fixed_abs, tag = 'smem constant byte address 0x4 - core index']
  #allocation1 [shape = 'u32[144,128]{1,0:T(1,128)}', space=vmem, size = 0x12000, scoped, tag = 'internal scratch']
  #allocation2 [shape = 's32[1]{0}', space=sflag, size = 0x4, scoped, tag = 'scoped memory for tpu_custom_call.1']
  #allocation3 [shape = 'u8[512]{0}', space=smem, size = 0x200, scoped, tag = 'prefetched SMEM operand 0']
  %s0 = inlined_call_operand.hbm [shape: f32[4], index: 0, kind: input, shape index: {}]
  %s1 = inlined_call_operand.hbm [shape: f32[4,512], index: 1, kind: input, shape index: {}]
  %s2 = inlined_call_operand.hbm [shape: f32[4,512], index: 2, kind: output, shape index: {}]
  %s3 = sld [smem:[#allocation0]]
  $region18: #{tpu_custom_call.1} parent=0
    _
  %s5 = ssub.s32 1, %s3
  %s6 = scalar_select 0, %s5, %s3
  %8 = dma.hbm_to_smem %s0, 16, [#allocation3], [#allocation2]
  %9 = dma.done [#allocation2], 16
  %10 = sfence
  $region1: #{tpu_custom_call.1} parent=0
    #allocation4 [shape = 'u8[8192]{0}', space=vmem, size = 0x2000, scoped, tag = 'input window, operand 1, single buffered']
    #allocation5 [shape = 's32[1]{0}', space=sflag, size = 0x4, scoped, tag = 'scoped memory for tpu_custom_call.1']
    #allocation6 [shape = 's32[1]{0}', space=sflag, size = 0x4, scoped, tag = 'scoped memory for tpu_custom_call.1']
    #allocation7 [shape = 'u8[8192]{0}', space=vmem, size = 0x2000, scoped, tag = 'output window, operand 0, single buffered']
    %11 = vsyncpa [#allocation5], 0
    %12 = vsyncpa [#allocation6], 0
    // Predicated region
    $region2: #{tpu_custom_call.1} parent=1 // pred_check
      _
    $region3: #{tpu_custom_call.1} parent=1 // pred_check_branch
      %14 = sbr.rel (0) target = $region5
    $region4: #{tpu_custom_call.1} parent=1 // pred_region
      %s16 = ssub.s32 256, 256
      %17 = vsyncadd [#allocation5], %s16
      %s19 = sshll.u32 [#allocation4], 4
      %s20 = int_to_ptr.vmem [resolvable:$true] %s19
      %22 = dma.hbm_to_vmem [thread:$0]  %s1, 256, %s20, [#allocation5]
    $region5: #{tpu_custom_call.1} parent=1 // pred_fallthru
      _
    // Predicated region
    $region6: #{tpu_custom_call.1} parent=1 // pred_check
      _
    $region7: #{tpu_custom_call.1} parent=1 // pred_check_branch
      %24 = sbr.rel (0) target = $region9
    $region8: #{tpu_custom_call.1} parent=1 // pred_region
      %25 = dma.done [#allocation5], 256
    $region9: #{tpu_custom_call.1} parent=1 // pred_fallthru
      _
    %s26 = sld [smem:[#allocation3]]
    %s27 = sld [smem:[#allocation3 + $0x1]]
    %s28 = sld [smem:[#allocation3 + $0x2]]
    %s29 = sld [smem:[#allocation3 + $0x3]]
    %v30 = vld [vmem:[#allocation4] sm:$0xff]
    %v31 = vld [vmem:[#allocation4 + $0x8] sm:$0xff]
    %v32 = vstv %s29
    %v33 = vmul.f32 %v30, %v32
    %v34 = vmul.f32 %v31, %v32
    %v35 = vstv %s28
    %v36 = vadd.f32 %v35, %v33
    %v37 = vadd.f32 %v35, %v34
    %v38 = vmul.f32 %v30, %v36
    %v39 = vmul.f32 %v31, %v37
    %v40 = vstv %s27
    %v41 = vadd.f32 %v40, %v38
    %v42 = vadd.f32 %v40, %v39
    %v43 = vmul.f32 %v30, %v41
    %v44 = vmul.f32 %v31, %v42
    %v45 = vstv %s26
    %v46 = vadd.f32 %v45, %v43
    %v47 = vadd.f32 %v45, %v44
    %48 = vst [vmem:[#allocation7] sm:$0xff] %v46
    %49 = vst [vmem:[#allocation7 + $0x8] sm:$0xff] %v47
    // Predicated region
    $region10: #{tpu_custom_call.1} parent=1 // pred_check
      _
    $region11: #{tpu_custom_call.1} parent=1 // pred_check_branch
      %51 = sbr.rel (0) target = $region13
    $region12: #{tpu_custom_call.1} parent=1 // pred_region
      %s53 = ssub.s32 256, 256
      %54 = vsyncadd [#allocation6], %s53
      %s56 = sshll.u32 [#allocation7], 4
      %s57 = int_to_ptr.vmem [resolvable:$true] %s56
      %59 = dma.vmem_to_hbm [thread:$0]  %s57, 256, %s2, [#allocation6]
    $region13: #{tpu_custom_call.1} parent=1 // pred_fallthru
      _
    // Predicated region
    $region14: #{tpu_custom_call.1} parent=1 // pred_check
      _
    $region15: #{tpu_custom_call.1} parent=1 // pred_check_branch
      %61 = sbr.rel (0) target = $region17
    $region16: #{tpu_custom_call.1} parent=1 // pred_region
      %62 = dma.done [#allocation6], 256
    $region17: #{tpu_custom_call.1} parent=1 // pred_fallthru
      _
    %63 = vsyncpa [#allocation5], 1
    %64 = vsyncpa [#allocation6], 1

</llo_original>
